<compile_context>
chip_gen: v6e
topology: v6e:2x2x1
jax: 0.10.0
libtpu: 0.0.40
codegen_flags: <defaults>
</compile_context>

<pallas_src>
import functools

import jax
import jax.numpy as jnp
from jax import lax
from jax.experimental import pallas as pl
from jax.experimental.pallas import tpu as pltpu

KH = KW = 3          # depthwise kernel (kernel_size=3, stride=1, padding=1)
STRIP_H = 8          # rows per in-kernel strip (VALU/MXU overlap unit)


def _round_up(x, m):
    return ((x + m - 1) // m) * m


def _pick_tile_h(h_pad, w_in, w_out, c_in, c_out, budget=20 * 1024 * 1024):
    """Largest row tile (multiple of 8 dividing h_pad) whose working set fits VMEM."""
    def vmem_bytes(th):
        return (2 * th * w_in * c_in * 2            # bf16 input tile, double-buffered
                + 2 * 2 * w_in * c_in * 2           # bf16 halo rows, double-buffered
                + 2 * th * w_out * c_out * 4        # f32 output tile, double-buffered
                + (STRIP_H + 2) * w_in * c_in * 4   # per-strip f32 window
                + STRIP_H * w_out * (c_in + c_out) * 4  # per-strip acc + matmul result
                + 2 * (9 * c_in + c_out) * 4 + 2 * c_in * c_out * 2)  # weights / bias
    cands = [th for th in range(8, h_pad + 1, 8) if h_pad % th == 0]
    fits = [th for th in cands if vmem_bytes(th) <= budget]
    if not fits:
        return cands[0]                             # smallest tile; rely on vmem limit
    multi = [th for th in fits if h_pad // th >= 2]  # prefer >=2 tiles -> pipeline depth
    return max(multi) if multi else max(fits)


@functools.lru_cache(maxsize=None)
def _sublane_roll_ok():
    """Probe: does pltpu.roll lower for a second-minor (sublane) axis on this
    toolchain and match jnp.roll semantics?  If not, fall back to sliced taps."""
    def k(x_ref, o_ref):
        o_ref[...] = pltpu.roll(x_ref[...], shift=-1, axis=1)
    try:
        x = jnp.arange(10 * 24 * 128, dtype=jnp.float32).reshape(10, 24, 128)
        y = pl.pallas_call(k, out_shape=jax.ShapeDtypeStruct(x.shape, x.dtype))(x)
        return bool(jnp.array_equal(y, jnp.roll(x, -1, axis=1)))
    except Exception:
        return False


def _sepconv_kernel(xm_ref, xh_ref, wdw_ref, wpw_ref, bias_ref, o_ref, *,
                    tile_h, w_out, use_roll):
    """One (batch, row-tile) grid step.

    xm_ref   : (1, TH, Wp, Cp)  bf16 padded-input rows [t*TH, t*TH + TH)
    xh_ref   : (1, 2,  Wp, Cp)  bf16 halo rows         [t*TH + TH, t*TH + TH + 2)
    wdw_ref  : (3, 3, Cp)       f32 depthwise weights with BN scale folded in
    wpw_ref  : (Cp, Cop)        bf16 pointwise weights
    bias_ref : (1, Cop)         f32 BN shift pushed through the pointwise conv
    o_ref    : (1, TH, Wt, Cop) f32 output rows
    """
    wdw = wdw_ref[...]           # (3, 3, Cp)
    wpw = wpw_ref[...]           # (Cp, Cop)
    bias = bias_ref[...]         # (1, Cop)
    cop = wpw.shape[1]

    # Strip-mine the row tile: the VALU depthwise of strip s is independent of
    # the MXU matmul of strip s-1, so the scheduler can overlap them.
    for s0 in range(0, tile_h, STRIP_H):
        rows = min(STRIP_H, tile_h - s0)

        # (rows + 2, Wp, Cp) window; halo rows only matter for the last strip.
        if s0 + rows + 2 <= tile_h:
            win = xm_ref[0, s0:s0 + rows + 2]
        else:
            win = jnp.concatenate([xm_ref[0, s0:tile_h], xh_ref[0]], axis=0)
        win = win.astype(jnp.float32)

        # 3x3 depthwise conv: 9 shift-and-FMA taps, f32 accumulation (v5e-safe).
        acc = None
        for kw in range(KW):
            if use_roll:
                # XLU roll keeps every W-slice sublane-aligned (offset 0); the
                # wrap-around only lands in the cropped padding columns.
                shifted = pltpu.roll(win, shift=-kw, axis=1) if kw else win
            for kh in range(KH):
                if use_roll:
                    tap = shifted[kh:kh + rows, :w_out, :]
                else:
                    tap = win[kh:kh + rows, kw:kw + w_out, :]
                term = tap * wdw[kh, kw]
                acc = term if acc is None else acc + term   # first tap inits acc

        # Pointwise 1x1 conv on the MXU (bf16 inputs, f32 accumulation) + bias.
        lhs = acc.reshape(rows * w_out, acc.shape[-1]).astype(jnp.bfloat16)
        out = jnp.dot(lhs, wpw, preferred_element_type=jnp.float32) + bias
        o_ref[0, s0:s0 + rows] = out.reshape(rows, w_out, cop).astype(o_ref.dtype)


def separable_conv2d(x_nchw, w_dw_oihw, gamma, beta, running_mean, running_var,
                     w_pw_oihw, eps=1e-5):
    """x_nchw: (N, C, H, W) float32.  Returns (N, C_out, H, W)."""
    N, C, H, W = x_nchw.shape
    C_out = w_pw_oihw.shape[0]

    # ---- static layout / tiling decisions ---------------------------------
    Cp = _round_up(C, 128)          # channels on the 128-lane axis
    Cop = _round_up(C_out, 128)     # lane-dense output stores
    Wt = _round_up(W, 8)            # output width (sublane aligned)
    Wp = Wt + 8                     # padded input width (>= Wt + 2, multiple of 8)
    Ht = _round_up(H, 8)            # output height (tileable)
    TH = _pick_tile_h(Ht, Wp, Wt, Cp, Cop)
    n_tiles = Ht // TH

    # ---- fold BatchNorm into the weights (eval-mode affine) ---------------
    scale = gamma / jnp.sqrt(running_var + eps)                    # (C,)
    shift = beta - running_mean * scale                            # (C,)
    wdw = jnp.transpose(w_dw_oihw[:, 0], (1, 2, 0)) * scale        # (3,3,C) BN-folded
    wpw = jnp.transpose(w_pw_oihw[:, :, 0, 0], (1, 0))             # (C, C_out)
    bias = shift @ wpw                                             # (C_out,)
    wdw = jnp.pad(wdw, ((0, 0), (0, 0), (0, Cp - C))).astype(jnp.float32)
    wpw = jnp.pad(wpw, ((0, Cp - C), (0, Cop - C_out))).astype(jnp.bfloat16)
    bias = jnp.pad(bias, (0, Cop - C_out)).reshape(1, Cop).astype(jnp.float32)

    # ---- input prep: NCHW -> NHWC, zero-pad spatial/channels, bf16 --------
    x = jnp.transpose(x_nchw, (0, 2, 3, 1))                        # (N, H, W, C)
    x = jnp.pad(x, ((0, 0),
                    (1, Ht + TH - H - 1),                          # rows: 1 + data + pad
                    (1, Wp - W - 1),                               # cols: 1 + data + pad
                    (0, Cp - C)))
    x = x.astype(jnp.bfloat16)                                     # (N, Ht+TH, Wp, Cp)

    grid = (N, n_tiles)
    out_shape = jax.ShapeDtypeStruct((N, Ht, Wt, Cop), jnp.float32)

    def run(use_roll):
        kern = functools.partial(_sepconv_kernel, tile_h=TH, w_out=Wt,
                                 use_roll=use_roll)
        return pl.pallas_call(
            kern,
            out_shape=out_shape,
            grid=grid,
            in_specs=[
                # main rows [t*TH, t*TH+TH)
                pl.BlockSpec((1, TH, Wp, Cp), lambda n, t: (n, t, 0, 0)),
                # 2 halo rows [t*TH+TH, t*TH+TH+2)  (same array, 2-row blocks)
                pl.BlockSpec((1, 2, Wp, Cp),
                             lambda n, t: (n, (t + 1) * (TH // 2), 0, 0)),
                pl.BlockSpec((KH, KW, Cp), lambda n, t: (0, 0, 0)),
                pl.BlockSpec((Cp, Cop), lambda n, t: (0, 0)),
                pl.BlockSpec((1, Cop), lambda n, t: (0, 0)),
            ],
            out_specs=pl.BlockSpec((1, TH, Wt, Cop), lambda n, t: (n, t, 0, 0)),
            compiler_params=pltpu.CompilerParams(
                dimension_semantics=("parallel", "parallel"),
                vmem_limit_bytes=32 * 1024 * 1024),
        )(x, x, wdw, wpw, bias)

    out = run(use_roll=_sublane_roll_ok())

    out = out[:, :H, :W, :C_out]                                   # crop padding
    return jnp.transpose(out, (0, 3, 1, 2)).astype(x_nchw.dtype)   # back to NCHW


def _reference(x_nchw, w_dw_oihw, gamma, beta, running_mean, running_var,
               w_pw_oihw, eps=1e-5):
    """Pure-JAX reference with PyTorch NCHW/OIHW conventions (f32)."""
    C = x_nchw.shape[1]
    dw = lax.conv_general_dilated(
        x_nchw, w_dw_oihw, window_strides=(1, 1), padding=((1, 1), (1, 1)),
        feature_group_count=C, dimension_numbers=("NCHW", "OIHW", "NCHW"))
    scale = gamma / jnp.sqrt(running_var + eps)
    shift = beta - running_mean * scale
    bn = dw * scale[None, :, None, None] + shift[None, :, None, None]
    pw = lax.conv_general_dilated(
        bn, w_pw_oihw, window_strides=(1, 1), padding="VALID",
        dimension_numbers=("NCHW", "OIHW", "NCHW"))
    return pw


if __name__ == "__main__":
    N, C_in, C_out, H, W = 2, 4, 8, 16, 16

    key = jax.random.PRNGKey(0)
    k_x, k_dw, k_pw, k_g, k_b, k_m, k_v = jax.random.split(key, 7)

    x = jax.random.normal(k_x, (N, C_in, H, W), jnp.float32)
    # depthwise Conv2d(C_in, C_in, 3, groups=C_in, bias=False): weight (C_in, 1, 3, 3)
    w_dw = jax.random.normal(k_dw, (C_in, 1, 3, 3), jnp.float32) * 0.2
    # pointwise Conv2d(C_in, C_out, 1, bias=False): weight (C_out, C_in, 1, 1)
    w_pw = jax.random.normal(k_pw, (C_out, C_in, 1, 1), jnp.float32) * 0.2
    # BatchNorm2d(C_in) parameters / running stats
    gamma = 1.0 + 0.1 * jax.random.normal(k_g, (C_in,), jnp.float32)
    beta = 0.1 * jax.random.normal(k_b, (C_in,), jnp.float32)
    running_mean = 0.1 * jax.random.normal(k_m, (C_in,), jnp.float32)
    running_var = 1.0 + 0.1 * jax.random.uniform(k_v, (C_in,), jnp.float32)

    out = separable_conv2d(x, w_dw, gamma, beta, running_mean, running_var, w_pw)
    out = jax.block_until_ready(out)

    ref = _reference(x, w_dw, gamma, beta, running_mean, running_var, w_pw)
    assert out.shape == (N, C_out, H, W), out.shape
    # bf16 activations / bf16 MXU operands -> looser tolerance than pure f32.
    assert jnp.allclose(out, ref, atol=2e-2, rtol=2e-2), \
        float(jnp.max(jnp.abs(out - ref)))

    print("KERNEL_OK")
</pallas_src>

<mosaic_0001>
module attributes {stable_mosaic.version = 11 : i64} {
  func.func @_sepconv_kernel(%arg0: i32, %arg1: i32, %arg2: memref<1x8x24x128xbf16, #tpu.memory_space<vmem>>, %arg3: memref<1x2x24x128xbf16, #tpu.memory_space<vmem>>, %arg4: memref<3x3x128xf32, #tpu.memory_space<vmem>>, %arg5: memref<128x128xbf16, #tpu.memory_space<vmem>>, %arg6: memref<1x128xf32, #tpu.memory_space<vmem>>, %arg7: memref<1x8x16x128xf32, #tpu.memory_space<vmem>>) attributes {dimension_semantics = [#tpu.dimension_semantics<parallel>, #tpu.dimension_semantics<parallel>], iteration_bounds = array<i64: 2, 2>, scalar_prefetch = 0 : i64, scratch_operands = 0 : i64, tpu.core_type = #tpu.core_type<tc>, window_params = [{transform_indices = @transform_0, window_bounds = array<i64: 1, 8, 24, 128>}, {transform_indices = @transform_1, window_bounds = array<i64: 1, 2, 24, 128>}, {pipeline_mode = #tpu.pipeline_mode<synchronous>, transform_indices = @transform_2, window_bounds = array<i64: 3, 3, 128>}, {pipeline_mode = #tpu.pipeline_mode<synchronous>, transform_indices = @transform_3, window_bounds = array<i64: 128, 128>}, {pipeline_mode = #tpu.pipeline_mode<synchronous>, transform_indices = @transform_4, window_bounds = array<i64: 1, 128>}, {transform_indices = @transform_5, window_bounds = array<i64: 1, 8, 16, 128>}]} {
    %c0 = arith.constant 0 : index
    %c0_0 = arith.constant 0 : index
    %c0_1 = arith.constant 0 : index
    %0 = vector.load %arg4[%c0, %c0_0, %c0_1] : memref<3x3x128xf32, #tpu.memory_space<vmem>>, vector<3x3x128xf32>
    %c0_2 = arith.constant 0 : index
    %c0_3 = arith.constant 0 : index
    %1 = vector.load %arg5[%c0_2, %c0_3] : memref<128x128xbf16, #tpu.memory_space<vmem>>, vector<128x128xbf16>
    %c0_4 = arith.constant 0 : index
    %c0_5 = arith.constant 0 : index
    %2 = vector.load %arg6[%c0_4, %c0_5] : memref<1x128xf32, #tpu.memory_space<vmem>>, vector<1x128xf32>
    %c0_6 = arith.constant 0 : index
    %c0_7 = arith.constant 0 : index
    %c0_8 = arith.constant 0 : index
    %c0_9 = arith.constant 0 : index
    %3 = vector.load %arg2[%c0_6, %c0_7, %c0_8, %c0_9] : memref<1x8x24x128xbf16, #tpu.memory_space<vmem>>, vector<1x8x24x128xbf16>
    %4 = vector.shape_cast %3 : vector<1x8x24x128xbf16> to vector<8x24x128xbf16>
    %c0_10 = arith.constant 0 : index
    %c0_11 = arith.constant 0 : index
    %c0_12 = arith.constant 0 : index
    %c0_13 = arith.constant 0 : index
    %5 = vector.load %arg3[%c0_10, %c0_11, %c0_12, %c0_13] : memref<1x2x24x128xbf16, #tpu.memory_space<vmem>>, vector<1x2x24x128xbf16>
    %6 = vector.shape_cast %5 : vector<1x2x24x128xbf16> to vector<2x24x128xbf16>
    %7 = tpu.concatenate %4, %6 in 0 : vector<8x24x128xbf16>, vector<2x24x128xbf16> -> vector<10x24x128xbf16>
    %8 = arith.extf %7 : vector<10x24x128xbf16> to vector<10x24x128xf32>
    %9 = vector.extract_strided_slice %8 {offsets = [0, 0, 0], sizes = [8, 16, 128], strides = [1, 1, 1]} : vector<10x24x128xf32> to vector<8x16x128xf32>
    %10 = vector.extract_strided_slice %0 {offsets = [0, 0, 0], sizes = [1, 1, 128], strides = [1, 1, 1]} : vector<3x3x128xf32> to vector<1x1x128xf32>
    %11 = vector.shape_cast %10 : vector<1x1x128xf32> to vector<128xf32>
    %12 = vector.shape_cast %11 : vector<128xf32> to vector<1x1x128xf32>
    %13 = vector.broadcast %12 : vector<1x1x128xf32> to vector<8x16x128xf32>
    %14 = arith.mulf %9, %13 : vector<8x16x128xf32>
    %15 = vector.extract_strided_slice %8 {offsets = [1, 0, 0], sizes = [8, 16, 128], strides = [1, 1, 1]} : vector<10x24x128xf32> to vector<8x16x128xf32>
    %16 = vector.extract_strided_slice %0 {offsets = [1, 0, 0], sizes = [1, 1, 128], strides = [1, 1, 1]} : vector<3x3x128xf32> to vector<1x1x128xf32>
    %17 = vector.shape_cast %16 : vector<1x1x128xf32> to vector<128xf32>
    %18 = vector.shape_cast %17 : vector<128xf32> to vector<1x1x128xf32>
    %19 = vector.broadcast %18 : vector<1x1x128xf32> to vector<8x16x128xf32>
    %20 = arith.mulf %15, %19 : vector<8x16x128xf32>
    %21 = arith.addf %14, %20 : vector<8x16x128xf32>
    %22 = vector.extract_strided_slice %8 {offsets = [2, 0, 0], sizes = [8, 16, 128], strides = [1, 1, 1]} : vector<10x24x128xf32> to vector<8x16x128xf32>
    %23 = vector.extract_strided_slice %0 {offsets = [2, 0, 0], sizes = [1, 1, 128], strides = [1, 1, 1]} : vector<3x3x128xf32> to vector<1x1x128xf32>
    %24 = vector.shape_cast %23 : vector<1x1x128xf32> to vector<128xf32>
    %25 = vector.shape_cast %24 : vector<128xf32> to vector<1x1x128xf32>
    %26 = vector.broadcast %25 : vector<1x1x128xf32> to vector<8x16x128xf32>
    %27 = arith.mulf %22, %26 : vector<8x16x128xf32>
    %28 = arith.addf %21, %27 : vector<8x16x128xf32>
    %29 = vector.extract_strided_slice %8 {offsets = [0, 1, 0], sizes = [8, 16, 128], strides = [1, 1, 1]} : vector<10x24x128xf32> to vector<8x16x128xf32>
    %30 = vector.extract_strided_slice %0 {offsets = [0, 1, 0], sizes = [1, 1, 128], strides = [1, 1, 1]} : vector<3x3x128xf32> to vector<1x1x128xf32>
    %31 = vector.shape_cast %30 : vector<1x1x128xf32> to vector<128xf32>
    %32 = vector.shape_cast %31 : vector<128xf32> to vector<1x1x128xf32>
    %33 = vector.broadcast %32 : vector<1x1x128xf32> to vector<8x16x128xf32>
    %34 = arith.mulf %29, %33 : vector<8x16x128xf32>
    %35 = arith.addf %28, %34 : vector<8x16x128xf32>
    %36 = vector.extract_strided_slice %8 {offsets = [1, 1, 0], sizes = [8, 16, 128], strides = [1, 1, 1]} : vector<10x24x128xf32> to vector<8x16x128xf32>
    %37 = vector.extract_strided_slice %0 {offsets = [1, 1, 0], sizes = [1, 1, 128], strides = [1, 1, 1]} : vector<3x3x128xf32> to vector<1x1x128xf32>
    %38 = vector.shape_cast %37 : vector<1x1x128xf32> to vector<128xf32>
    %39 = vector.shape_cast %38 : vector<128xf32> to vector<1x1x128xf32>
    %40 = vector.broadcast %39 : vector<1x1x128xf32> to vector<8x16x128xf32>
    %41 = arith.mulf %36, %40 : vector<8x16x128xf32>
    %42 = arith.addf %35, %41 : vector<8x16x128xf32>
    %43 = vector.extract_strided_slice %8 {offsets = [2, 1, 0], sizes = [8, 16, 128], strides = [1, 1, 1]} : vector<10x24x128xf32> to vector<8x16x128xf32>
    %44 = vector.extract_strided_slice %0 {offsets = [2, 1, 0], sizes = [1, 1, 128], strides = [1, 1, 1]} : vector<3x3x128xf32> to vector<1x1x128xf32>
    %45 = vector.shape_cast %44 : vector<1x1x128xf32> to vector<128xf32>
    %46 = vector.shape_cast %45 : vector<128xf32> to vector<1x1x128xf32>
    %47 = vector.broadcast %46 : vector<1x1x128xf32> to vector<8x16x128xf32>
    %48 = arith.mulf %43, %47 : vector<8x16x128xf32>
    %49 = arith.addf %42, %48 : vector<8x16x128xf32>
    %50 = vector.extract_strided_slice %8 {offsets = [0, 2, 0], sizes = [8, 16, 128], strides = [1, 1, 1]} : vector<10x24x128xf32> to vector<8x16x128xf32>
    %51 = vector.extract_strided_slice %0 {offsets = [0, 2, 0], sizes = [1, 1, 128], strides = [1, 1, 1]} : vector<3x3x128xf32> to vector<1x1x128xf32>
    %52 = vector.shape_cast %51 : vector<1x1x128xf32> to vector<128xf32>
    %53 = vector.shape_cast %52 : vector<128xf32> to vector<1x1x128xf32>
    %54 = vector.broadcast %53 : vector<1x1x128xf32> to vector<8x16x128xf32>
    %55 = arith.mulf %50, %54 : vector<8x16x128xf32>
    %56 = arith.addf %49, %55 : vector<8x16x128xf32>
    %57 = vector.extract_strided_slice %8 {offsets = [1, 2, 0], sizes = [8, 16, 128], strides = [1, 1, 1]} : vector<10x24x128xf32> to vector<8x16x128xf32>
    %58 = vector.extract_strided_slice %0 {offsets = [1, 2, 0], sizes = [1, 1, 128], strides = [1, 1, 1]} : vector<3x3x128xf32> to vector<1x1x128xf32>
    %59 = vector.shape_cast %58 : vector<1x1x128xf32> to vector<128xf32>
    %60 = vector.shape_cast %59 : vector<128xf32> to vector<1x1x128xf32>
    %61 = vector.broadcast %60 : vector<1x1x128xf32> to vector<8x16x128xf32>
    %62 = arith.mulf %57, %61 : vector<8x16x128xf32>
    %63 = arith.addf %56, %62 : vector<8x16x128xf32>
    %64 = vector.extract_strided_slice %8 {offsets = [2, 2, 0], sizes = [8, 16, 128], strides = [1, 1, 1]} : vector<10x24x128xf32> to vector<8x16x128xf32>
    %65 = vector.extract_strided_slice %0 {offsets = [2, 2, 0], sizes = [1, 1, 128], strides = [1, 1, 1]} : vector<3x3x128xf32> to vector<1x1x128xf32>
    %66 = vector.shape_cast %65 : vector<1x1x128xf32> to vector<128xf32>
    %67 = vector.shape_cast %66 : vector<128xf32> to vector<1x1x128xf32>
    %68 = vector.broadcast %67 : vector<1x1x128xf32> to vector<8x16x128xf32>
    %69 = arith.mulf %64, %68 : vector<8x16x128xf32>
    %70 = arith.addf %63, %69 : vector<8x16x128xf32>
    %71 = vector.shape_cast %70 : vector<8x16x128xf32> to vector<128x128xf32>
    %72 = arith.truncf %71 : vector<128x128xf32> to vector<128x128xbf16>
    %cst = arith.constant dense<0.000000e+00> : vector<128x128xf32>
    %73 = tpu.matmul %72, %1, %cst {dimension_numbers = #tpu.dot_dimension_numbers<[1], [0], [0], [1], [0, 0, 1, 1], [], []>} : vector<128x128xbf16>, vector<128x128xbf16>, vector<128x128xf32> -> vector<128x128xf32>
    %74 = vector.broadcast %2 : vector<1x128xf32> to vector<128x128xf32>
    %75 = arith.addf %73, %74 : vector<128x128xf32>
    %76 = vector.shape_cast %75 : vector<128x128xf32> to vector<8x16x128xf32>
    %c0_14 = arith.constant 0 : index
    %c0_15 = arith.constant 0 : index
    %c0_16 = arith.constant 0 : index
    %c0_17 = arith.constant 0 : index
    %77 = vector.load %arg7[%c0_14, %c0_15, %c0_16, %c0_17] : memref<1x8x16x128xf32, #tpu.memory_space<vmem>>, vector<1x8x16x128xf32>
    %78 = vector.shape_cast %77 : vector<1x8x16x128xf32> to vector<8x16x128xf32>
    %79 = vector.shape_cast %76 : vector<8x16x128xf32> to vector<1x8x16x128xf32>
    tpu.vector_store %arg7[%c0_14, %c0_15, %c0_16, %c0_17], %79 {strides = array<i32>} : memref<1x8x16x128xf32, #tpu.memory_space<vmem>>, vector<1x8x16x128xf32>,
    return
  }
  func.func @transform_0(%arg0: i32, %arg1: i32) -> (i32, i32, i32, i32) {
    %c0_i32 = arith.constant 0 : i32
    %c0_i32_0 = arith.constant 0 : i32
    %c0_i32_1 = arith.constant 0 : i32
    return %arg0, %arg1, %c0_i32, %c0_i32_0 : i32, i32, i32, i32
  }
  func.func @transform_1(%arg0: i32, %arg1: i32) -> (i32, i32, i32, i32) {
    %c1_i32 = arith.constant 1 : i32
    %0 = arith.addi %arg1, %c1_i32 : i32
    %c4_i32 = arith.constant 4 : i32
    %1 = arith.muli %0, %c4_i32 : i32
    %c0_i32 = arith.constant 0 : i32
    %c0_i32_0 = arith.constant 0 : i32
    %c0_i32_1 = arith.constant 0 : i32
    return %arg0, %1, %c0_i32, %c0_i32_0 : i32, i32, i32, i32
  }
  func.func @transform_2(%arg0: i32, %arg1: i32) -> (i32, i32, i32) {
    %c0_i32 = arith.constant 0 : i32
    %c0_i32_0 = arith.constant 0 : i32
    %c0_i32_1 = arith.constant 0 : i32
    %c0_i32_2 = arith.constant 0 : i32
    return %c0_i32, %c0_i32_0, %c0_i32_1 : i32, i32, i32
  }
  func.func @transform_3(%arg0: i32, %arg1: i32) -> (i32, i32) {
    %c0_i32 = arith.constant 0 : i32
    %c0_i32_0 = arith.constant 0 : i32
    %c0_i32_1 = arith.constant 0 : i32
    return %c0_i32, %c0_i32_0 : i32, i32
  }
  func.func @transform_4(%arg0: i32, %arg1: i32) -> (i32, i32) {
    %c0_i32 = arith.constant 0 : i32
    %c0_i32_0 = arith.constant 0 : i32
    %c0_i32_1 = arith.constant 0 : i32
    return %c0_i32, %c0_i32_0 : i32, i32
  }
  func.func @transform_5(%arg0: i32, %arg1: i32) -> (i32, i32, i32, i32) {
    %c0_i32 = arith.constant 0 : i32
    %c0_i32_0 = arith.constant 0 : i32
    %c0_i32_1 = arith.constant 0 : i32
    return %arg0, %arg1, %c0_i32, %c0_i32_0 : i32, i32, i32, i32
  }
}

</mosaic_0001>

<llo_original>
// kernel: tpu_custom_call.1
$region0: #{tpu_custom_call.1}
  #allocation0 [shape = 'u32[]', space=smem, size = 0x4, offset = 0x4, fixed_abs, tag = 'smem constant byte address 0x4 - core index']
  #allocation1 [shape = 'u32[144,128]{1,0:T(1,128)}', space=vmem, size = 0x12000, scoped, tag = 'internal scratch']
  %s0 = inlined_call_operand.hbm [shape: bf16[2,24,24,128], index: 0, kind: input, shape index: {}]
  %s1 = inlined_call_operand.hbm [shape: bf16[2,24,24,128], index: 1, kind: input, shape index: {}]
  %s2 = inlined_call_operand.hbm [shape: f32[3,3,128], index: 2, kind: input, shape index: {}]
  %s3 = inlined_call_operand.hbm [shape: bf16[128,128], index: 3, kind: input, shape index: {}]
  %s4 = inlined_call_operand.vmem [shape: f32[1,128], index: 4, kind: input, shape index: {}]
  %s5 = inlined_call_operand.hbm [shape: f32[2,16,16,128], index: 5, kind: output, shape index: {}]
  %s6 = sld [smem:[#allocation0]]
  $region69: #{tpu_custom_call.1} parent=0
    _
  %s8 = ssub.s32 1, %s6
  %s9 = scalar_select 0, %s8, %s6
  $region1: #{tpu_custom_call.1} parent=0
    #allocation2 [shape = 'u8[98304]{0}', space=vmem, size = 0x18000, scoped, tag = 'input window, operand 0']
    #allocation3 [shape = 's32[2]{0}', space=sflag, size = 0x8, scoped, tag = 'scoped memory for tpu_custom_call.1']
    #allocation4 [shape = 's32[2]{0}', space=sflag, size = 0x8, scoped, tag = 'scoped memory for tpu_custom_call.1']
    #allocation5 [shape = 'u8[24576]{0}', space=vmem, size = 0x6000, scoped, tag = 'input window, operand 1']
    #allocation6 [shape = 's32[2]{0}', space=sflag, size = 0x8, scoped, tag = 'scoped memory for tpu_custom_call.1']
    #allocation7 [shape = 'u8[6144]{0}', space=vmem, size = 0x1800, scoped, tag = 'input window, operand 2, single buffered']
    #allocation8 [shape = 'u8[32768]{0}', space=vmem, size = 0x8000, scoped, tag = 'input window, operand 3, single buffered']
    #allocation9 [shape = 's32[1]{0}', space=sflag, size = 0x4, scoped, tag = 'scoped memory for tpu_custom_call.1']
    #allocation10 [shape = 'u8[131072]{0}', space=vmem, size = 0x20000, scoped, tag = 'output window, operand 0']
    %10 = vsyncpa [#allocation3], 0
    %s11 = scalar_lea.sflag [#allocation3], 1
    %12 = vsyncpa %s11, 0
    %13 = vsyncpa [#allocation6], 0
    %s14 = scalar_lea.sflag [#allocation6], 1
    %15 = vsyncpa %s14, 0
    %16 = vsyncpa [#allocation9], 0
    %17 = vsyncpa [#allocation4], 0
    %s18 = scalar_lea.sflag [#allocation4], 1
    %19 = vsyncpa %s18, 0
    loop: start=0, step=1, limit=6
    $region2: #{tpu_custom_call.1} parent=1 // loop_pre_header
      _
    $region3: #{tpu_custom_call.1} parent=1 // loop_header
      %s21 = sphi 0, %s25
      %p22 = scmp.ge.s32.totalorder %s21, 6
      %s28 = sphi 0, %s40
      %s29 = sphi 0, %s36
      %s30 = sphi 0, %s28
      %s31 = sphi 0, %s29
      %s32 = sphi 0, %s30
      %s33 = sphi 0, %s31
      %s45 = sphi 0, %s47
      %s48 = sphi 0, %s45
      %s49 = sphi 0, %s48
      %s65 = sphi 0, %s49
      %s77 = sphi 0, %s79
      %s80 = sphi 0, %s77
      %s81 = sphi 0, %s80
      %s97 = sphi 0, %s81
      %s101 = sphi 0, %s101
      %s103 = sphi 0, %s101
      %s104 = sphi 0, %s103
      %s118 = sphi 0, %s104
      %s122 = sphi 0, %s122
      %s124 = sphi 0, %s122
      %s125 = sphi 0, %s124
      %s139 = sphi 0, %s125
      %s143 = sphi 0, %s143
      %s145 = sphi 0, %s143
      %s146 = sphi 0, %s145
      %s160 = sphi 0, %s146
      %s168 = sphi 0, %s170
      %s171 = sphi 0, %s168
      %s172 = sphi 0, %s171
      %s188 = sphi 0, %s172
    $region4: #{tpu_custom_call.1} parent=1 // loop_header_branch
      %24 = sbr.rel (%p22) target = $region8
    $region5: #{tpu_custom_call.1} parent=1 // loop_body
      %s26 = ssub.s32 %s21, 1
      %s27 = ssub.s32 %s21, 2
      %s34 = sadd.s32 1, %s29
      %p35 = scmp.ge.s32.totalorder %s34, 2
      %s36 = scalar_select %p35, 0, %s34
      %s37 = sadd.s32 1, %s28
      %s38 = scalar_select %p35, %s37, %s28
      %p39 = scmp.ge.s32.totalorder %s38, 2
      %s40 = scalar_select %p39, 0, %s38
      %s41 = ssub.s32 %s28, %s40
      %s42 = ssub.s32 %s29, %s36
      %s43 = sor.u32 %s41, %s42
      %p44 = scmp.eq.s32.totalorder %s43, 0
      %s46 = sadd.s32 %s45, 1
      %s47 = scalar_select %p44, %s45, %s46
      %p50 = pneg %p44
      %p51 = scmp.eq.s32.totalorder %s21, 3
      %p52 = por %p50, %p51
      %p53 = scmp.ne.s32.totalorder %s45, %s48
      %p54 = scmp.eq.s32.totalorder %s21, 0
      %p55 = por %p53, %p54
      %p56 = scmp.ne.s32.totalorder %s45, %s48
      %p57 = scmp.eq.s32.totalorder %s26, 3
      %p58 = por %p56, %p57
      %p59 = scmp.ne.s32.totalorder %s48, %s49
      %p60 = scmp.eq.s32.totalorder %s26, 0
      %p61 = por %p59, %p60
      %p62 = scmp.ne.s32.totalorder %s48, %s49
      %p63 = scmp.eq.s32.totalorder %s27, 3
      %p64 = por %p62, %p63
      %p66 = scmp.ne.s32.totalorder %s49, %s65
      %p67 = scmp.eq.s32.totalorder %s27, 0
      %p68 = por %p66, %p67
      %s69 = sadd.s32 %s29, 1
      %s70 = smul.u32 %s69, 4
      %s71 = sadd.s32 %s36, 1
      %s72 = smul.u32 %s71, 4
      %s73 = ssub.s32 %s28, %s40
      %s74 = ssub.s32 %s70, %s72
      %s75 = sor.u32 %s73, %s74
      %p76 = scmp.eq.s32.totalorder %s75, 0
      %s78 = sadd.s32 %s77, 1
      %s79 = scalar_select %p76, %s77, %s78
      %p82 = pneg %p76
      %p83 = scmp.eq.s32.totalorder %s21, 3
      %p84 = por %p82, %p83
      %p85 = scmp.ne.s32.totalorder %s77, %s80
      %p86 = scmp.eq.s32.totalorder %s21, 0
      %p87 = por %p85, %p86
      %p88 = scmp.ne.s32.totalorder %s77, %s80
      %p89 = scmp.eq.s32.totalorder %s26, 3
      %p90 = por %p88, %p89
      %p91 = scmp.ne.s32.totalorder %s80, %s81
      %p92 = scmp.eq.s32.totalorder %s26, 0
      %p93 = por %p91, %p92
      %p94 = scmp.ne.s32.totalorder %s80, %s81
      %p95 = scmp.eq.s32.totalorder %s27, 3
      %p96 = por %p94, %p95
      %p98 = scmp.ne.s32.totalorder %s81, %s97
      %p99 = scmp.eq.s32.totalorder %s27, 0
      %p100 = por %p98, %p99
      %s102 = sadd.s32 %s101, 1
      %p105 = scmp.eq.s32.totalorder %s21, 3
      %p106 = scmp.ne.s32.totalorder %s101, %s103
      %p107 = scmp.eq.s32.totalorder %s21, 0
      %p108 = por %p106, %p107
      %p109 = scmp.ne.s32.totalorder %s101, %s103
      %p110 = scmp.eq.s32.totalorder %s26, 3
      %p111 = por %p109, %p110
      %p112 = scmp.ne.s32.totalorder %s103, %s104
      %p113 = scmp.eq.s32.totalorder %s26, 0
      %p114 = por %p112, %p113
      %p115 = scmp.ne.s32.totalorder %s103, %s104
      %p116 = scmp.eq.s32.totalorder %s27, 3
      %p117 = por %p115, %p116
      %p119 = scmp.ne.s32.totalorder %s104, %s118
      %p120 = scmp.eq.s32.totalorder %s27, 0
      %p121 = por %p119, %p120
      %s123 = sadd.s32 %s122, 1
      %p126 = scmp.eq.s32.totalorder %s21, 3
      %p127 = scmp.ne.s32.totalorder %s122, %s124
      %p128 = scmp.eq.s32.totalorder %s21, 0
      %p129 = por %p127, %p128
      %p130 = scmp.ne.s32.totalorder %s122, %s124
      %p131 = scmp.eq.s32.totalorder %s26, 3
      %p132 = por %p130, %p131
      %p133 = scmp.ne.s32.totalorder %s124, %s125
      %p134 = scmp.eq.s32.totalorder %s26, 0
      %p135 = por %p133, %p134
      %p136 = scmp.ne.s32.totalorder %s124, %s125
      %p137 = scmp.eq.s32.totalorder %s27, 3
      %p138 = por %p136, %p137
      %p140 = scmp.ne.s32.totalorder %s125, %s139
      %p141 = scmp.eq.s32.totalorder %s27, 0
      %p142 = por %p140, %p141
      %s144 = sadd.s32 %s143, 1
      %p147 = scmp.eq.s32.totalorder %s21, 3
      %p148 = scmp.ne.s32.totalorder %s143, %s145
      %p149 = scmp.eq.s32.totalorder %s21, 0
      %p150 = por %p148, %p149
      %p151 = scmp.ne.s32.totalorder %s143, %s145
      %p152 = scmp.eq.s32.totalorder %s26, 3
      %p153 = por %p151, %p152
      %p154 = scmp.ne.s32.totalorder %s145, %s146
      %p155 = scmp.eq.s32.totalorder %s26, 0
      %p156 = por %p154, %p155
      %p157 = scmp.ne.s32.totalorder %s145, %s146
      %p158 = scmp.eq.s32.totalorder %s27, 3
      %p159 = por %p157, %p158
      %p161 = scmp.ne.s32.totalorder %s146, %s160
      %p162 = scmp.eq.s32.totalorder %s27, 0
      %p163 = por %p161, %p162
      %s164 = ssub.s32 %s28, %s40
      %s165 = ssub.s32 %s29, %s36
      %s166 = sor.u32 %s164, %s165
      %p167 = scmp.eq.s32.totalorder %s166, 0
      %s169 = sadd.s32 %s168, 1
      %s170 = scalar_select %p167, %s168, %s169
      %p173 = pneg %p167
      %p174 = scmp.eq.s32.totalorder %s21, 3
      %p175 = por %p173, %p174
      %p176 = scmp.ne.s32.totalorder %s168, %s171
      %p177 = scmp.eq.s32.totalorder %s21, 0
      %p178 = por %p176, %p177
      %p179 = scmp.ne.s32.totalorder %s168, %s171
      %p180 = scmp.eq.s32.totalorder %s26, 3
      %p181 = por %p179, %p180
      %p182 = scmp.ne.s32.totalorder %s171, %s172
      %p183 = scmp.eq.s32.totalorder %s26, 0
      %p184 = por %p182, %p183
      %p185 = scmp.ne.s32.totalorder %s171, %s172
      %p186 = scmp.eq.s32.totalorder %s27, 3
      %p187 = por %p185, %p186
      %p189 = scmp.ne.s32.totalorder %s172, %s188
      %p190 = scmp.eq.s32.totalorder %s27, 0
      %p191 = por %p189, %p190
      %p192 = scmp.le.s32.totalorder 1, %s21
      %p193 = scmp.lt.s32.totalorder %s21, 5
      %p194 = pnand %p192, %p193
      %p195 = pneg %p194
      // Predicated region
      $region9: #{tpu_custom_call.1} parent=5 // pred_check
        _
      $region10: #{tpu_custom_call.1} parent=5 // pred_check_branch
        %197 = sbr.rel (%p194) target = $region12
      $region11: #{tpu_custom_call.1} parent=5 // pred_region
        %s198 = ssub.s32 %s21, 1
        // Predicated region
        $region13: #{tpu_custom_call.1} parent=11 // pred_check
          %p199 = pneg %p114
        $region14: #{tpu_custom_call.1} parent=11 // pred_check_branch
          %201 = sbr.rel (%p199) target = $region16
        $region15: #{tpu_custom_call.1} parent=11 // pred_region
          %s203 = ssub.s32 192, 192
          %204 = vsyncadd [#allocation6], %s203
          %s205 = sshll.u32 [#allocation7], 4
          %s206 = int_to_ptr.vmem [resolvable:$true] %s205
          %211 = dma.hbm_to_vmem [thread:$0]  %s2, 192, %s206, [#allocation6], 64, 64, 4
        $region16: #{tpu_custom_call.1} parent=11 // pred_fallthru
          _
        // Predicated region
        $region17: #{tpu_custom_call.1} parent=11 // pred_check
          %p212 = pneg %p135
        $region18: #{tpu_custom_call.1} parent=11 // pred_check_branch
          %214 = sbr.rel (%p212) target = $region20
        $region19: #{tpu_custom_call.1} parent=11 // pred_region
          %s216 = ssub.s32 1024, 1024
          %217 = vsyncadd [#allocation9], %s216
          %s218 = sshll.u32 [#allocation8], 4
          %s219 = int_to_ptr.vmem [resolvable:$true] %s218
          %224 = dma.hbm_to_vmem [thread:$0]  %s3, 1024, %s219, [#allocation9], 64, 64, 4
        $region20: #{tpu_custom_call.1} parent=11 // pred_fallthru
          _
        // Predicated region
        $region21: #{tpu_custom_call.1} parent=11 // pred_check
          %p225 = pneg %p156
        $region22: #{tpu_custom_call.1} parent=11 // pred_check_branch
          %227 = sbr.rel (%p225) target = $region24
        $region23: #{tpu_custom_call.1} parent=11 // pred_region
          _
        $region24: #{tpu_custom_call.1} parent=11 // pred_fallthru
          _
      $region12: #{tpu_custom_call.1} parent=5 // pred_fallthru
        _
      %p228 = scmp.lt.s32.totalorder %s21, 4
      // Predicated region
      $region25: #{tpu_custom_call.1} parent=5 // pred_check
        %p229 = pneg %p228
      $region26: #{tpu_custom_call.1} parent=5 // pred_check_branch
        %231 = sbr.rel (%p229) target = $region28
      $region27: #{tpu_custom_call.1} parent=5 // pred_region
        // Predicated region
        $region29: #{tpu_custom_call.1} parent=27 // pred_check
          %p232 = pneg %p55
        $region30: #{tpu_custom_call.1} parent=27 // pred_check_branch
          %234 = sbr.rel (%p232) target = $region32
        $region31: #{tpu_custom_call.1} parent=27 // pred_region
          %s235 = sand.u32 %s45, 1
          %s236 = scalar_lea.sflag [#allocation3], %s235
          %s237 = sand.u32 %s45, 1
          %s238 = smul.addr %s237, 96
          %s239 = scalar_lea.vmem [#allocation2], %s238
          %s240 = smul.u32 8, %s29
          %s242 = ssub.s32 1536, 1536
          %243 = vsyncadd %s236, %s242
          %s244 = smul.addr %s240, 3
          %s245 = smul.addr %s28, 72
          %s246 = sadd.s32 %s244, %s245
          %s247 = smul.addr %s246, 64
          %s248 = scalar_lea.hbm %s0, %s247
          %s249 = sshll.u32 %s239, 4
          %s250 = int_to_ptr.vmem [resolvable:$true] %s249
          %255 = dma.hbm_to_vmem [thread:$0]  %s248, 1536, %s250, %s236, 64, 64, 4
        $region32: #{tpu_custom_call.1} parent=27 // pred_fallthru
          _
        // Predicated region
        $region33: #{tpu_custom_call.1} parent=27 // pred_check
          %p256 = pneg %p87
        $region34: #{tpu_custom_call.1} parent=27 // pred_check_branch
          %258 = sbr.rel (%p256) target = $region36
        $region35: #{tpu_custom_call.1} parent=27 // pred_region
          %s259 = sand.u32 %s21, 1
          %s260 = scalar_lea.sflag [#allocation6], %s259
          %s261 = sand.u32 %s77, 1
          %s262 = smul.addr %s261, 24
          %s263 = scalar_lea.vmem [#allocation5], %s262
          %s264 = sadd.s32 %s29, 1
          %s265 = smul.u32 %s264, 4
          %s266 = smul.u32 2, %s265
          %s268 = ssub.s32 384, 384
          %269 = vsyncadd %s260, %s268
          %s270 = smul.addr %s266, 3
          %s271 = smul.addr %s28, 72
          %s272 = sadd.s32 %s270, %s271
          %s273 = smul.addr %s272, 64
          %s274 = scalar_lea.hbm %s1, %s273
          %s275 = sshll.u32 %s263, 4
          %s276 = int_to_ptr.vmem [resolvable:$true] %s275
          %281 = dma.hbm_to_vmem [thread:$0]  %s274, 384, %s276, %s260, 64, 64, 4
        $region36: #{tpu_custom_call.1} parent=27 // pred_fallthru
          _
      $region28: #{tpu_custom_call.1} parent=5 // pred_fallthru
        _
      %p282 = scmp.le.s32.totalorder 1, %s21
      %p283 = scmp.lt.s32.totalorder %s21, 5
      %p284 = pnand %p282, %p283
      %p285 = pneg %p284
      // Predicated region
      $region37: #{tpu_custom_call.1} parent=5 // pred_check
        _
      $region38: #{tpu_custom_call.1} parent=5 // pred_check_branch
        %287 = sbr.rel (%p284) target = $region40
      $region39: #{tpu_custom_call.1} parent=5 // pred_region
        %s288 = ssub.s32 %s21, 1
        %s289 = sand.u32 %s48, 1
        %s290 = scalar_lea.sflag [#allocation3], %s289
        %s291 = sand.u32 %s48, 1
        %s292 = smul.addr %s291, 96
        %s293 = scalar_lea.vmem [#allocation2], %s292
        // Predicated region
        $region41: #{tpu_custom_call.1} parent=39 // pred_check
          %p294 = pneg %p61
        $region42: #{tpu_custom_call.1} parent=39 // pred_check_branch
          %296 = sbr.rel (%p294) target = $region44
        $region43: #{tpu_custom_call.1} parent=39 // pred_region
          %297 = dma.done %s290, 1536
        $region44: #{tpu_custom_call.1} parent=39 // pred_fallthru
          _
        %s298 = sand.u32 %s26, 1
        %s299 = scalar_lea.sflag [#allocation6], %s298
        %s300 = sand.u32 %s80, 1
        %s301 = smul.addr %s300, 24
        %s302 = scalar_lea.vmem [#allocation5], %s301
        // Predicated region
        $region45: #{tpu_custom_call.1} parent=39 // pred_check
          %p303 = pneg %p93
        $region46: #{tpu_custom_call.1} parent=39 // pred_check_branch
          %305 = sbr.rel (%p303) target = $region48
        $region47: #{tpu_custom_call.1} parent=39 // pred_region
          %306 = dma.done %s299, 384
        $region48: #{tpu_custom_call.1} parent=39 // pred_fallthru
          _
        // Predicated region
        $region49: #{tpu_custom_call.1} parent=39 // pred_check
          %p307 = pneg %p114
        $region50: #{tpu_custom_call.1} parent=39 // pred_check_branch
          %309 = sbr.rel (%p307) target = $region52
        $region51: #{tpu_custom_call.1} parent=39 // pred_region
          %310 = dma.done [#allocation6], 192
        $region52: #{tpu_custom_call.1} parent=39 // pred_fallthru
          _
        // Predicated region
        $region53: #{tpu_custom_call.1} parent=39 // pred_check
          %p311 = pneg %p135
        $region54: #{tpu_custom_call.1} parent=39 // pred_check_branch
          %313 = sbr.rel (%p311) target = $region56
        $region55: #{tpu_custom_call.1} parent=39 // pred_region
          %314 = dma.done [#allocation9], 1024
        $region56: #{tpu_custom_call.1} parent=39 // pred_fallthru
          _
        %s315 = sand.u32 %s48, 1
        %s316 = scalar_lea.sflag [#allocation3], %s315
        %s317 = sand.u32 %s48, 1
        %s318 = smul.addr %s317, 96
        %s319 = scalar_lea.vmem [#allocation2], %s318
        %p320 = pneg %p61
        %p321 = pneg %p58
        %s322 = sand.u32 %s26, 1
        %s323 = scalar_lea.sflag [#allocation6], %s322
        %s324 = sand.u32 %s80, 1
        %s325 = smul.addr %s324, 24
        %s326 = scalar_lea.vmem [#allocation5], %s325
        %p327 = pneg %p93
        %p328 = pneg %p90
        %p329 = pneg %p114
        %p330 = pneg %p111
        %p331 = pneg %p135
        %p332 = pneg %p132
        %p333 = pneg %p156
        %p334 = pneg %p153
        %p335 = pneg %p184
        %p336 = pneg %p181
        %s337 = sand.u32 %s171, 1
        %s338 = scalar_lea.sflag [#allocation4], %s337
        %s339 = sand.u32 %s171, 1
        %s340 = smul.addr %s339, 128
        %s341 = scalar_lea.vmem [#allocation10], %s340
        %s342 = smul.u32 8, %s31
        %s343 = sadd.s32 %s31, 1
        %s344 = smul.u32 %s343, 4
        %s345 = smul.u32 2, %s344
        %s346 = smul.u32 8, %s31
        %v348 = vld [vmem:[#allocation7] sm:$0x7]
        %v349 = vld [vmem:[#allocation7 + $0x4] sm:$0x7]
        %v350 = vld [vmem:[#allocation7 + $0x8] sm:$0x7]
        %v351 = vld [vmem:[#allocation8] sm:$0xf]
        %v352 = vld [vmem:[#allocation8 + $0x4] sm:$0xf]
        %v353 = vld [vmem:[#allocation8 + $0x8] sm:$0xf]
        %v354 = vld [vmem:[#allocation8 + $0xc] sm:$0xf]
        %v355 = vld [vmem:[#allocation8 + $0x10] sm:$0xf]
        %v356 = vld [vmem:[#allocation8 + $0x14] sm:$0xf]
        %v357 = vld [vmem:[#allocation8 + $0x18] sm:$0xf]
        %v358 = vld [vmem:[#allocation8 + $0x1c] sm:$0xf]
        %v359 = vld [vmem:[#allocation8 + $0x20] sm:$0xf]
        %v360 = vld [vmem:[#allocation8 + $0x24] sm:$0xf]
        %v361 = vld [vmem:[#allocation8 + $0x28] sm:$0xf]
        %v362 = vld [vmem:[#allocation8 + $0x2c] sm:$0xf]
        %v363 = vld [vmem:[#allocation8 + $0x30] sm:$0xf]
        %v364 = vld [vmem:[#allocation8 + $0x34] sm:$0xf]
        %v365 = vld [vmem:[#allocation8 + $0x38] sm:$0xf]
        %v366 = vld [vmem:[#allocation8 + $0x3c] sm:$0xf]
        %v367 = vld [vmem:[%s4] sm:$0x1]
        %v368 = vld [vmem:[%s293] sm:$0xf]
        %v369 = vld [vmem:[%s293 + $0x4] sm:$0xf]
        %v370 = vld [vmem:[%s293 + $0x8] sm:$0xf]
        %v371 = vld [vmem:[%s293 + $0xc] sm:$0xf]
        %v372 = vld [vmem:[%s293 + $0x10] sm:$0xf]
        %v373 = vld [vmem:[%s293 + $0x14] sm:$0xf]
        %v374 = vld [vmem:[%s293 + $0x18] sm:$0xf]
        %v375 = vld [vmem:[%s293 + $0x1c] sm:$0xf]
        %v376 = vld [vmem:[%s293 + $0x20] sm:$0xf]
        %v377 = vld [vmem:[%s293 + $0x24] sm:$0xf]
        %v378 = vld [vmem:[%s293 + $0x28] sm:$0xf]
        %v379 = vld [vmem:[%s293 + $0x2c] sm:$0xf]
        %v380 = vld [vmem:[%s293 + $0x30] sm:$0xf]
        %v381 = vld [vmem:[%s293 + $0x34] sm:$0xf]
        %v382 = vld [vmem:[%s293 + $0x38] sm:$0xf]
        %v383 = vld [vmem:[%s293 + $0x3c] sm:$0xf]
        %v384 = vld [vmem:[%s293 + $0x40] sm:$0xf]
        %v385 = vld [vmem:[%s293 + $0x44] sm:$0xf]
        %v386 = vld [vmem:[%s293 + $0x48] sm:$0xf]
        %v387 = vld [vmem:[%s293 + $0x4c] sm:$0xf]
        %v388 = vld [vmem:[%s293 + $0x50] sm:$0xf]
        %v389 = vld [vmem:[%s293 + $0x54] sm:$0xf]
        %v390 = vld [vmem:[%s293 + $0x58] sm:$0xf]
        %v391 = vld [vmem:[%s293 + $0x5c] sm:$0xf]
        %v392 = vld [vmem:[%s302] sm:$0xf]
        %v393 = vld [vmem:[%s302 + $0x4] sm:$0xf]
        %v394 = vld [vmem:[%s302 + $0x8] sm:$0xf]
        %v395 = vld [vmem:[%s302 + $0xc] sm:$0xf]
        %v396 = vld [vmem:[%s302 + $0x10] sm:$0xf]
        %v397 = vld [vmem:[%s302 + $0x14] sm:$0xf]
        %v398 = vunpack.c.l.bf16 %v368
        %v399 = vunpack.c.l.bf16 %v369
        %v400 = vunpack.c.l.bf16 %v370
        %v401 = vunpack.c.l.bf16 %v371
        %v402 = vunpack.c.l.bf16 %v372
        %v403 = vunpack.c.l.bf16 %v373
        %v404 = vunpack.c.l.bf16 %v374
        %v405 = vunpack.c.l.bf16 %v375
        %v406 = vunpack.c.l.bf16 %v376
        %v407 = vunpack.c.l.bf16 %v377
        %v408 = vunpack.c.l.bf16 %v378
        %v409 = vunpack.c.l.bf16 %v379
        %v410 = vunpack.c.l.bf16 %v380
        %v411 = vunpack.c.l.bf16 %v381
        %v412 = vunpack.c.l.bf16 %v382
        %v413 = vunpack.c.l.bf16 %v383
        %v414 = vunpack.c.l.bf16 %v384
        %v415 = vunpack.c.l.bf16 %v385
        %v416 = vunpack.c.l.bf16 %v386
        %v417 = vunpack.c.l.bf16 %v387
        %v418 = vunpack.c.l.bf16 %v388
        %v419 = vunpack.c.l.bf16 %v389
        %v420 = vunpack.c.l.bf16 %v390
        %v421 = vunpack.c.l.bf16 %v391
        %v422 = vunpack.c.l.bf16 %v392
        %v423 = vunpack.c.l.bf16 %v393
        %v424 = vunpack.c.l.bf16 %v394
        %v425 = vunpack.c.l.bf16 %v395
        %v426 = vunpack.c.l.bf16 %v396
        %v427 = vunpack.c.l.bf16 %v397
        %v428 = vlaneseq
        %v429 = vshrl.u32 %v428, 7
        %v430 = vsub.s32 0, %v429
        %v431 = vrot.slane %v348, %v430
        %v432 = vmul.f32 %v398, %v431
        %v433 = vmul.f32 %v399, %v431
        %v434 = vmul.f32 %v401, %v431
        %v435 = vmul.f32 %v402, %v431
        %v436 = vmul.f32 %v404, %v431
        %v437 = vmul.f32 %v405, %v431
        %v438 = vmul.f32 %v407, %v431
        %v439 = vmul.f32 %v408, %v431
        %v440 = vmul.f32 %v410, %v431
        %v441 = vmul.f32 %v411, %v431
        %v442 = vmul.f32 %v413, %v431
        %v443 = vmul.f32 %v414, %v431
        %v444 = vmul.f32 %v416, %v431
        %v445 = vmul.f32 %v417, %v431
        %v446 = vmul.f32 %v419, %v431
        %v447 = vmul.f32 %v420, %v431
        %v448 = vlaneseq
        %v449 = vshrl.u32 %v448, 7
        %v450 = vsub.s32 0, %v449
        %v451 = vrot.slane %v349, %v450
        %v452 = vmul.f32 %v401, %v451
        %v453 = vmul.f32 %v402, %v451
        %v454 = vmul.f32 %v404, %v451
        %v455 = vmul.f32 %v405, %v451
        %v456 = vmul.f32 %v407, %v451
        %v457 = vmul.f32 %v408, %v451
        %v458 = vmul.f32 %v410, %v451
        %v459 = vmul.f32 %v411, %v451
        %v460 = vmul.f32 %v413, %v451
        %v461 = vmul.f32 %v414, %v451
        %v462 = vmul.f32 %v416, %v451
        %v463 = vmul.f32 %v417, %v451
        %v464 = vmul.f32 %v419, %v451
        %v465 = vmul.f32 %v420, %v451
        %v466 = vmul.f32 %v422, %v451
        %v467 = vmul.f32 %v423, %v451
        %v468 = vadd.f32 %v432, %v452
        %v469 = vadd.f32 %v433, %v453
        %v470 = vadd.f32 %v434, %v454
        %v471 = vadd.f32 %v435, %v455
        %v472 = vadd.f32 %v436, %v456
        %v473 = vadd.f32 %v437, %v457
        %v474 = vadd.f32 %v438, %v458
        %v475 = vadd.f32 %v439, %v459
        %v476 = vadd.f32 %v440, %v460
        %v477 = vadd.f32 %v441, %v461
        %v478 = vadd.f32 %v442, %v462
        %v479 = vadd.f32 %v443, %v463
        %v480 = vadd.f32 %v444, %v464
        %v481 = vadd.f32 %v445, %v465
        %v482 = vadd.f32 %v446, %v466
        %v483 = vadd.f32 %v447, %v467
        %v484 = vlaneseq
        %v485 = vshrl.u32 %v484, 7
        %v486 = vsub.s32 0, %v485
        %v487 = vrot.slane %v350, %v486
        %v488 = vmul.f32 %v404, %v487
        %v489 = vmul.f32 %v405, %v487
        %v490 = vmul.f32 %v407, %v487
        %v491 = vmul.f32 %v408, %v487
        %v492 = vmul.f32 %v410, %v487
        %v493 = vmul.f32 %v411, %v487
        %v494 = vmul.f32 %v413, %v487
        %v495 = vmul.f32 %v414, %v487
        %v496 = vmul.f32 %v416, %v487
        %v497 = vmul.f32 %v417, %v487
        %v498 = vmul.f32 %v419, %v487
        %v499 = vmul.f32 %v420, %v487
        %v500 = vmul.f32 %v422, %v487
        %v501 = vmul.f32 %v423, %v487
        %v502 = vmul.f32 %v425, %v487
        %v503 = vmul.f32 %v426, %v487
        %v504 = vadd.f32 %v468, %v488
        %v505 = vadd.f32 %v469, %v489
        %v506 = vadd.f32 %v470, %v490
        %v507 = vadd.f32 %v471, %v491
        %v508 = vadd.f32 %v472, %v492
        %v509 = vadd.f32 %v473, %v493
        %v510 = vadd.f32 %v474, %v494
        %v511 = vadd.f32 %v475, %v495
        %v512 = vadd.f32 %v476, %v496
        %v513 = vadd.f32 %v477, %v497
        %v514 = vadd.f32 %v478, %v498
        %v515 = vadd.f32 %v479, %v499
        %v516 = vadd.f32 %v480, %v500
        %v517 = vadd.f32 %v481, %v501
        %v518 = vadd.f32 %v482, %v502
        %v519 = vadd.f32 %v483, %v503
        %v520 = vlaneseq
        %v521 = vshrl.u32 %v520, 7
        %v522 = vsub.s32 1, %v521
        %v523 = vrot.slane %v348, %v522
        %v524 = vmul.f32 %v398, %v523
        %v525 = vmul.f32 %v399, %v523
        %v526 = vmul.f32 %v400, %v523
        %v527 = vmul.f32 %v401, %v523
        %v528 = vmul.f32 %v402, %v523
        %v529 = vmul.f32 %v403, %v523
        %v530 = vmul.f32 %v404, %v523
        %v531 = vmul.f32 %v405, %v523
        %v532 = vmul.f32 %v406, %v523
        %v533 = vmul.f32 %v407, %v523
        %v534 = vmul.f32 %v408, %v523
        %v535 = vmul.f32 %v409, %v523
        %v536 = vmul.f32 %v410, %v523
        %v537 = vmul.f32 %v411, %v523
        %v538 = vmul.f32 %v412, %v523
        %v539 = vmul.f32 %v413, %v523
        %v540 = vmul.f32 %v414, %v523
        %v541 = vmul.f32 %v415, %v523
        %v542 = vmul.f32 %v416, %v523
        %v543 = vmul.f32 %v417, %v523
        %v544 = vmul.f32 %v418, %v523
        %v545 = vmul.f32 %v419, %v523
        %v546 = vmul.f32 %v420, %v523
        %v547 = vmul.f32 %v421, %v523
        %vm572 = vcmask 1046528
        %v573 = vrot.slane %v524, 1
        %v574 = vrot.slane %v525, 1
        %v575 = vsel %vm572, %v573, %v574
        %v576 = vrot.slane %v526, 1
        %v577 = vsel %vm572, %v574, %v576
        %v578 = vrot.slane %v527, 1
        %v579 = vrot.slane %v528, 1
        %v580 = vsel %vm572, %v578, %v579
        %v581 = vrot.slane %v529, 1
        %v582 = vsel %vm572, %v579, %v581
        %v583 = vrot.slane %v530, 1
        %v584 = vrot.slane %v531, 1
        %v585 = vsel %vm572, %v583, %v584
        %v586 = vrot.slane %v532, 1
        %v587 = vsel %vm572, %v584, %v586
        %v588 = vrot.slane %v533, 1
        %v589 = vrot.slane %v534, 1
        %v590 = vsel %vm572, %v588, %v589
        %v591 = vrot.slane %v535, 1
        %v592 = vsel %vm572, %v589, %v591
        %v593 = vrot.slane %v536, 1
        %v594 = vrot.slane %v537, 1
        %v595 = vsel %vm572, %v593, %v594
        %v596 = vrot.slane %v538, 1
        %v597 = vsel %vm572, %v594, %v596
        %v598 = vrot.slane %v539, 1
        %v599 = vrot.slane %v540, 1
        %v600 = vsel %vm572, %v598, %v599
        %v601 = vrot.slane %v541, 1
        %v602 = vsel %vm572, %v599, %v601
        %v603 = vrot.slane %v542, 1
        %v604 = vrot.slane %v543, 1
        %v605 = vsel %vm572, %v603, %v604
        %v606 = vrot.slane %v544, 1
        %v607 = vsel %vm572, %v604, %v606
        %v608 = vrot.slane %v545, 1
        %v609 = vrot.slane %v546, 1
        %v610 = vsel %vm572, %v608, %v609
        %v611 = vrot.slane %v547, 1
        %v612 = vsel %vm572, %v609, %v611
        %v629 = vadd.f32 %v504, %v575
        %v630 = vadd.f32 %v505, %v577
        %v631 = vadd.f32 %v506, %v580
        %v632 = vadd.f32 %v507, %v582
        %v633 = vadd.f32 %v508, %v585
        %v634 = vadd.f32 %v509, %v587
        %v635 = vadd.f32 %v510, %v590
        %v636 = vadd.f32 %v511, %v592
        %v637 = vadd.f32 %v512, %v595
        %v638 = vadd.f32 %v513, %v597
        %v639 = vadd.f32 %v514, %v600
        %v640 = vadd.f32 %v515, %v602
        %v641 = vadd.f32 %v516, %v605
        %v642 = vadd.f32 %v517, %v607
        %v643 = vadd.f32 %v518, %v610
        %v644 = vadd.f32 %v519, %v612
        %v645 = vlaneseq
        %v646 = vshrl.u32 %v645, 7
        %v647 = vsub.s32 1, %v646
        %v648 = vrot.slane %v349, %v647
        %v649 = vmul.f32 %v401, %v648
        %v650 = vmul.f32 %v402, %v648
        %v651 = vmul.f32 %v403, %v648
        %v652 = vmul.f32 %v404, %v648
        %v653 = vmul.f32 %v405, %v648
        %v654 = vmul.f32 %v406, %v648
        %v655 = vmul.f32 %v407, %v648
        %v656 = vmul.f32 %v408, %v648
        %v657 = vmul.f32 %v409, %v648
        %v658 = vmul.f32 %v410, %v648
        %v659 = vmul.f32 %v411, %v648
        %v660 = vmul.f32 %v412, %v648
        %v661 = vmul.f32 %v413, %v648
        %v662 = vmul.f32 %v414, %v648
        %v663 = vmul.f32 %v415, %v648
        %v664 = vmul.f32 %v416, %v648
        %v665 = vmul.f32 %v417, %v648
        %v666 = vmul.f32 %v418, %v648
        %v667 = vmul.f32 %v419, %v648
        %v668 = vmul.f32 %v420, %v648
        %v669 = vmul.f32 %v421, %v648
        %v670 = vmul.f32 %v422, %v648
        %v671 = vmul.f32 %v423, %v648
        %v672 = vmul.f32 %v424, %v648
        %v697 = vrot.slane %v649, 1
        %v698 = vrot.slane %v650, 1
        %v699 = vsel %vm572, %v697, %v698
        %v700 = vrot.slane %v651, 1
        %v701 = vsel %vm572, %v698, %v700
        %v702 = vrot.slane %v652, 1
        %v703 = vrot.slane %v653, 1
        %v704 = vsel %vm572, %v702, %v703
        %v705 = vrot.slane %v654, 1
        %v706 = vsel %vm572, %v703, %v705
        %v707 = vrot.slane %v655, 1
        %v708 = vrot.slane %v656, 1
        %v709 = vsel %vm572, %v707, %v708
        %v710 = vrot.slane %v657, 1
        %v711 = vsel %vm572, %v708, %v710
        %v712 = vrot.slane %v658, 1
        %v713 = vrot.slane %v659, 1
        %v714 = vsel %vm572, %v712, %v713
        %v715 = vrot.slane %v660, 1
        %v716 = vsel %vm572, %v713, %v715
        %v717 = vrot.slane %v661, 1
        %v718 = vrot.slane %v662, 1
        %v719 = vsel %vm572, %v717, %v718
        %v720 = vrot.slane %v663, 1
        %v721 = vsel %vm572, %v718, %v720
        %v722 = vrot.slane %v664, 1
        %v723 = vrot.slane %v665, 1
        %v724 = vsel %vm572, %v722, %v723
        %v725 = vrot.slane %v666, 1
        %v726 = vsel %vm572, %v723, %v725
        %v727 = vrot.slane %v667, 1
        %v728 = vrot.slane %v668, 1
        %v729 = vsel %vm572, %v727, %v728
        %v730 = vrot.slane %v669, 1
        %v731 = vsel %vm572, %v728, %v730
        %v732 = vrot.slane %v670, 1
        %v733 = vrot.slane %v671, 1
        %v734 = vsel %vm572, %v732, %v733
        %v735 = vrot.slane %v672, 1
        %v736 = vsel %vm572, %v733, %v735
        %v753 = vadd.f32 %v629, %v699
        %v754 = vadd.f32 %v630, %v701
        %v755 = vadd.f32 %v631, %v704
        %v756 = vadd.f32 %v632, %v706
        %v757 = vadd.f32 %v633, %v709
        %v758 = vadd.f32 %v634, %v711
        %v759 = vadd.f32 %v635, %v714
        %v760 = vadd.f32 %v636, %v716
        %v761 = vadd.f32 %v637, %v719
        %v762 = vadd.f32 %v638, %v721
        %v763 = vadd.f32 %v639, %v724
        %v764 = vadd.f32 %v640, %v726
        %v765 = vadd.f32 %v641, %v729
        %v766 = vadd.f32 %v642, %v731
        %v767 = vadd.f32 %v643, %v734
        %v768 = vadd.f32 %v644, %v736
        %v769 = vlaneseq
        %v770 = vshrl.u32 %v769, 7
        %v771 = vsub.s32 1, %v770
        %v772 = vrot.slane %v350, %v771
        %v773 = vmul.f32 %v404, %v772
        %v774 = vmul.f32 %v405, %v772
        %v775 = vmul.f32 %v406, %v772
        %v776 = vmul.f32 %v407, %v772
        %v777 = vmul.f32 %v408, %v772
        %v778 = vmul.f32 %v409, %v772
        %v779 = vmul.f32 %v410, %v772
        %v780 = vmul.f32 %v411, %v772
        %v781 = vmul.f32 %v412, %v772
        %v782 = vmul.f32 %v413, %v772
        %v783 = vmul.f32 %v414, %v772
        %v784 = vmul.f32 %v415, %v772
        %v785 = vmul.f32 %v416, %v772
        %v786 = vmul.f32 %v417, %v772
        %v787 = vmul.f32 %v418, %v772
        %v788 = vmul.f32 %v419, %v772
        %v789 = vmul.f32 %v420, %v772
        %v790 = vmul.f32 %v421, %v772
        %v791 = vmul.f32 %v422, %v772
        %v792 = vmul.f32 %v423, %v772
        %v793 = vmul.f32 %v424, %v772
        %v794 = vmul.f32 %v425, %v772
        %v795 = vmul.f32 %v426, %v772
        %v796 = vmul.f32 %v427, %v772
        %v821 = vrot.slane %v773, 1
        %v822 = vrot.slane %v774, 1
        %v823 = vsel %vm572, %v821, %v822
        %v824 = vrot.slane %v775, 1
        %v825 = vsel %vm572, %v822, %v824
        %v826 = vrot.slane %v776, 1
        %v827 = vrot.slane %v777, 1
        %v828 = vsel %vm572, %v826, %v827
        %v829 = vrot.slane %v778, 1
        %v830 = vsel %vm572, %v827, %v829
        %v831 = vrot.slane %v779, 1
        %v832 = vrot.slane %v780, 1
        %v833 = vsel %vm572, %v831, %v832
        %v834 = vrot.slane %v781, 1
        %v835 = vsel %vm572, %v832, %v834
        %v836 = vrot.slane %v782, 1
        %v837 = vrot.slane %v783, 1
        %v838 = vsel %vm572, %v836, %v837
        %v839 = vrot.slane %v784, 1
        %v840 = vsel %vm572, %v837, %v839
        %v841 = vrot.slane %v785, 1
        %v842 = vrot.slane %v786, 1
        %v843 = vsel %vm572, %v841, %v842
        %v844 = vrot.slane %v787, 1
        %v845 = vsel %vm572, %v842, %v844
        %v846 = vrot.slane %v788, 1
        %v847 = vrot.slane %v789, 1
        %v848 = vsel %vm572, %v846, %v847
        %v849 = vrot.slane %v790, 1
        %v850 = vsel %vm572, %v847, %v849
        %v851 = vrot.slane %v791, 1
        %v852 = vrot.slane %v792, 1
        %v853 = vsel %vm572, %v851, %v852
        %v854 = vrot.slane %v793, 1
        %v855 = vsel %vm572, %v852, %v854
        %v856 = vrot.slane %v794, 1
        %v857 = vrot.slane %v795, 1
        %v858 = vsel %vm572, %v856, %v857
        %v859 = vrot.slane %v796, 1
        %v860 = vsel %vm572, %v857, %v859
        %v877 = vadd.f32 %v753, %v823
        %v878 = vadd.f32 %v754, %v825
        %v879 = vadd.f32 %v755, %v828
        %v880 = vadd.f32 %v756, %v830
        %v881 = vadd.f32 %v757, %v833
        %v882 = vadd.f32 %v758, %v835
        %v883 = vadd.f32 %v759, %v838
        %v884 = vadd.f32 %v760, %v840
        %v885 = vadd.f32 %v761, %v843
        %v886 = vadd.f32 %v762, %v845
        %v887 = vadd.f32 %v763, %v848
        %v888 = vadd.f32 %v764, %v850
        %v889 = vadd.f32 %v765, %v853
        %v890 = vadd.f32 %v766, %v855
        %v891 = vadd.f32 %v767, %v858
        %v892 = vadd.f32 %v768, %v860
        %v893 = vlaneseq
        %v894 = vshrl.u32 %v893, 7
        %v895 = vsub.s32 2, %v894
        %v896 = vrot.slane %v348, %v895
        %v897 = vmul.f32 %v398, %v896
        %v898 = vmul.f32 %v399, %v896
        %v899 = vmul.f32 %v400, %v896
        %v900 = vmul.f32 %v401, %v896
        %v901 = vmul.f32 %v402, %v896
        %v902 = vmul.f32 %v403, %v896
        %v903 = vmul.f32 %v404, %v896
        %v904 = vmul.f32 %v405, %v896
        %v905 = vmul.f32 %v406, %v896
        %v906 = vmul.f32 %v407, %v896
        %v907 = vmul.f32 %v408, %v896
        %v908 = vmul.f32 %v409, %v896
        %v909 = vmul.f32 %v410, %v896
        %v910 = vmul.f32 %v411, %v896
        %v911 = vmul.f32 %v412, %v896
        %v912 = vmul.f32 %v413, %v896
        %v913 = vmul.f32 %v414, %v896
        %v914 = vmul.f32 %v415, %v896
        %v915 = vmul.f32 %v416, %v896
        %v916 = vmul.f32 %v417, %v896
        %v917 = vmul.f32 %v418, %v896
        %v918 = vmul.f32 %v419, %v896
        %v919 = vmul.f32 %v420, %v896
        %v920 = vmul.f32 %v421, %v896
        %vm945 = vcmask 1045504
        %v946 = vrot.slane %v897, 2
        %v947 = vrot.slane %v898, 2
        %v948 = vsel %vm945, %v946, %v947
        %v949 = vrot.slane %v899, 2
        %v950 = vsel %vm945, %v947, %v949
        %v951 = vrot.slane %v900, 2
        %v952 = vrot.slane %v901, 2
        %v953 = vsel %vm945, %v951, %v952
        %v954 = vrot.slane %v902, 2
        %v955 = vsel %vm945, %v952, %v954
        %v956 = vrot.slane %v903, 2
        %v957 = vrot.slane %v904, 2
        %v958 = vsel %vm945, %v956, %v957
        %v959 = vrot.slane %v905, 2
        %v960 = vsel %vm945, %v957, %v959
        %v961 = vrot.slane %v906, 2
        %v962 = vrot.slane %v907, 2
        %v963 = vsel %vm945, %v961, %v962
        %v964 = vrot.slane %v908, 2
        %v965 = vsel %vm945, %v962, %v964
        %v966 = vrot.slane %v909, 2
        %v967 = vrot.slane %v910, 2
        %v968 = vsel %vm945, %v966, %v967
        %v969 = vrot.slane %v911, 2
        %v970 = vsel %vm945, %v967, %v969
        %v971 = vrot.slane %v912, 2
        %v972 = vrot.slane %v913, 2
        %v973 = vsel %vm945, %v971, %v972
        %v974 = vrot.slane %v914, 2
        %v975 = vsel %vm945, %v972, %v974
        %v976 = vrot.slane %v915, 2
        %v977 = vrot.slane %v916, 2
        %v978 = vsel %vm945, %v976, %v977
        %v979 = vrot.slane %v917, 2
        %v980 = vsel %vm945, %v977, %v979
        %v981 = vrot.slane %v918, 2
        %v982 = vrot.slane %v919, 2
        %v983 = vsel %vm945, %v981, %v982
        %v984 = vrot.slane %v920, 2
        %v985 = vsel %vm945, %v982, %v984
        %v1002 = vadd.f32 %v877, %v948
        %v1003 = vadd.f32 %v878, %v950
        %v1004 = vadd.f32 %v879, %v953
        %v1005 = vadd.f32 %v880, %v955
        %v1006 = vadd.f32 %v881, %v958
        %v1007 = vadd.f32 %v882, %v960
        %v1008 = vadd.f32 %v883, %v963
        %v1009 = vadd.f32 %v884, %v965
        %v1010 = vadd.f32 %v885, %v968
        %v1011 = vadd.f32 %v886, %v970
        %v1012 = vadd.f32 %v887, %v973
        %v1013 = vadd.f32 %v888, %v975
        %v1014 = vadd.f32 %v889, %v978
        %v1015 = vadd.f32 %v890, %v980
        %v1016 = vadd.f32 %v891, %v983
        %v1017 = vadd.f32 %v892, %v985
        %v1018 = vlaneseq
        %v1019 = vshrl.u32 %v1018, 7
        %v1020 = vsub.s32 2, %v1019
        %v1021 = vrot.slane %v349, %v1020
        %v1022 = vmul.f32 %v401, %v1021
        %v1023 = vmul.f32 %v402, %v1021
        %v1024 = vmul.f32 %v403, %v1021
        %v1025 = vmul.f32 %v404, %v1021
        %v1026 = vmul.f32 %v405, %v1021
        %v1027 = vmul.f32 %v406, %v1021
        %v1028 = vmul.f32 %v407, %v1021
        %v1029 = vmul.f32 %v408, %v1021
        %v1030 = vmul.f32 %v409, %v1021
        %v1031 = vmul.f32 %v410, %v1021
        %v1032 = vmul.f32 %v411, %v1021
        %v1033 = vmul.f32 %v412, %v1021
        %v1034 = vmul.f32 %v413, %v1021
        %v1035 = vmul.f32 %v414, %v1021
        %v1036 = vmul.f32 %v415, %v1021
        %v1037 = vmul.f32 %v416, %v1021
        %v1038 = vmul.f32 %v417, %v1021
        %v1039 = vmul.f32 %v418, %v1021
        %v1040 = vmul.f32 %v419, %v1021
        %v1041 = vmul.f32 %v420, %v1021
        %v1042 = vmul.f32 %v421, %v1021
        %v1043 = vmul.f32 %v422, %v1021
        %v1044 = vmul.f32 %v423, %v1021
        %v1045 = vmul.f32 %v424, %v1021
        %v1070 = vrot.slane %v1022, 2
        %v1071 = vrot.slane %v1023, 2
        %v1072 = vsel %vm945, %v1070, %v1071
        %v1073 = vrot.slane %v1024, 2
        %v1074 = vsel %vm945, %v1071, %v1073
        %v1075 = vrot.slane %v1025, 2
        %v1076 = vrot.slane %v1026, 2
        %v1077 = vsel %vm945, %v1075, %v1076
        %v1078 = vrot.slane %v1027, 2
        %v1079 = vsel %vm945, %v1076, %v1078
        %v1080 = vrot.slane %v1028, 2
        %v1081 = vrot.slane %v1029, 2
        %v1082 = vsel %vm945, %v1080, %v1081
        %v1083 = vrot.slane %v1030, 2
        %v1084 = vsel %vm945, %v1081, %v1083
        %v1085 = vrot.slane %v1031, 2
        %v1086 = vrot.slane %v1032, 2
        %v1087 = vsel %vm945, %v1085, %v1086
        %v1088 = vrot.slane %v1033, 2
        %v1089 = vsel %vm945, %v1086, %v1088
        %v1090 = vrot.slane %v1034, 2
        %v1091 = vrot.slane %v1035, 2
        %v1092 = vsel %vm945, %v1090, %v1091
        %v1093 = vrot.slane %v1036, 2
        %v1094 = vsel %vm945, %v1091, %v1093
        %v1095 = vrot.slane %v1037, 2
        %v1096 = vrot.slane %v1038, 2
        %v1097 = vsel %vm945, %v1095, %v1096
        %v1098 = vrot.slane %v1039, 2
        %v1099 = vsel %vm945, %v1096, %v1098
        %v1100 = vrot.slane %v1040, 2
        %v1101 = vrot.slane %v1041, 2
        %v1102 = vsel %vm945, %v1100, %v1101
        %v1103 = vrot.slane %v1042, 2
        %v1104 = vsel %vm945, %v1101, %v1103
        %v1105 = vrot.slane %v1043, 2
        %v1106 = vrot.slane %v1044, 2
        %v1107 = vsel %vm945, %v1105, %v1106
        %v1108 = vrot.slane %v1045, 2
        %v1109 = vsel %vm945, %v1106, %v1108
        %v1126 = vadd.f32 %v1002, %v1072
        %v1127 = vadd.f32 %v1003, %v1074
        %v1128 = vadd.f32 %v1004, %v1077
        %v1129 = vadd.f32 %v1005, %v1079
        %v1130 = vadd.f32 %v1006, %v1082
        %v1131 = vadd.f32 %v1007, %v1084
        %v1132 = vadd.f32 %v1008, %v1087
        %v1133 = vadd.f32 %v1009, %v1089
        %v1134 = vadd.f32 %v1010, %v1092
        %v1135 = vadd.f32 %v1011, %v1094
        %v1136 = vadd.f32 %v1012, %v1097
        %v1137 = vadd.f32 %v1013, %v1099
        %v1138 = vadd.f32 %v1014, %v1102
        %v1139 = vadd.f32 %v1015, %v1104
        %v1140 = vadd.f32 %v1016, %v1107
        %v1141 = vadd.f32 %v1017, %v1109
        %v1142 = vlaneseq
        %v1143 = vshrl.u32 %v1142, 7
        %v1144 = vsub.s32 2, %v1143
        %v1145 = vrot.slane %v350, %v1144
        %v1146 = vmul.f32 %v404, %v1145
        %v1147 = vmul.f32 %v405, %v1145
        %v1148 = vmul.f32 %v406, %v1145
        %v1149 = vmul.f32 %v407, %v1145
        %v1150 = vmul.f32 %v408, %v1145
        %v1151 = vmul.f32 %v409, %v1145
        %v1152 = vmul.f32 %v410, %v1145
        %v1153 = vmul.f32 %v411, %v1145
        %v1154 = vmul.f32 %v412, %v1145
        %v1155 = vmul.f32 %v413, %v1145
        %v1156 = vmul.f32 %v414, %v1145
        %v1157 = vmul.f32 %v415, %v1145
        %v1158 = vmul.f32 %v416, %v1145
        %v1159 = vmul.f32 %v417, %v1145
        %v1160 = vmul.f32 %v418, %v1145
        %v1161 = vmul.f32 %v419, %v1145
        %v1162 = vmul.f32 %v420, %v1145
        %v1163 = vmul.f32 %v421, %v1145
        %v1164 = vmul.f32 %v422, %v1145
        %v1165 = vmul.f32 %v423, %v1145
        %v1166 = vmul.f32 %v424, %v1145
        %v1167 = vmul.f32 %v425, %v1145
        %v1168 = vmul.f32 %v426, %v1145
        %v1169 = vmul.f32 %v427, %v1145
        %v1194 = vrot.slane %v1146, 2
        %v1195 = vrot.slane %v1147, 2
        %v1196 = vsel %vm945, %v1194, %v1195
        %v1197 = vrot.slane %v1148, 2
        %v1198 = vsel %vm945, %v1195, %v1197
        %v1199 = vrot.slane %v1149, 2
        %v1200 = vrot.slane %v1150, 2
        %v1201 = vsel %vm945, %v1199, %v1200
        %v1202 = vrot.slane %v1151, 2
        %v1203 = vsel %vm945, %v1200, %v1202
        %v1204 = vrot.slane %v1152, 2
        %v1205 = vrot.slane %v1153, 2
        %v1206 = vsel %vm945, %v1204, %v1205
        %v1207 = vrot.slane %v1154, 2
        %v1208 = vsel %vm945, %v1205, %v1207
        %v1209 = vrot.slane %v1155, 2
        %v1210 = vrot.slane %v1156, 2
        %v1211 = vsel %vm945, %v1209, %v1210
        %v1212 = vrot.slane %v1157, 2
        %v1213 = vsel %vm945, %v1210, %v1212
        %v1214 = vrot.slane %v1158, 2
        %v1215 = vrot.slane %v1159, 2
        %v1216 = vsel %vm945, %v1214, %v1215
        %v1217 = vrot.slane %v1160, 2
        %v1218 = vsel %vm945, %v1215, %v1217
        %v1219 = vrot.slane %v1161, 2
        %v1220 = vrot.slane %v1162, 2
        %v1221 = vsel %vm945, %v1219, %v1220
        %v1222 = vrot.slane %v1163, 2
        %v1223 = vsel %vm945, %v1220, %v1222
        %v1224 = vrot.slane %v1164, 2
        %v1225 = vrot.slane %v1165, 2
        %v1226 = vsel %vm945, %v1224, %v1225
        %v1227 = vrot.slane %v1166, 2
        %v1228 = vsel %vm945, %v1225, %v1227
        %v1229 = vrot.slane %v1167, 2
        %v1230 = vrot.slane %v1168, 2
        %v1231 = vsel %vm945, %v1229, %v1230
        %v1232 = vrot.slane %v1169, 2
        %v1233 = vsel %vm945, %v1230, %v1232
        %v1250 = vadd.f32 %v1126, %v1196
        %v1251 = vadd.f32 %v1127, %v1198
        %v1252 = vadd.f32 %v1128, %v1201
        %v1253 = vadd.f32 %v1129, %v1203
        %v1254 = vadd.f32 %v1130, %v1206
        %v1255 = vadd.f32 %v1131, %v1208
        %v1256 = vadd.f32 %v1132, %v1211
        %v1257 = vadd.f32 %v1133, %v1213
        %v1258 = vadd.f32 %v1134, %v1216
        %v1259 = vadd.f32 %v1135, %v1218
        %v1260 = vadd.f32 %v1136, %v1221
        %v1261 = vadd.f32 %v1137, %v1223
        %v1262 = vadd.f32 %v1138, %v1226
        %v1263 = vadd.f32 %v1139, %v1228
        %v1264 = vadd.f32 %v1140, %v1231
        %v1265 = vadd.f32 %v1141, %v1233
        %v1266 = vpack.c.bf16 %v1251, %v1250
        %v1267 = vpack.c.bf16 %v1253, %v1252
        %v1268 = vpack.c.bf16 %v1255, %v1254
        %v1269 = vpack.c.bf16 %v1257, %v1256
        %v1270 = vpack.c.bf16 %v1259, %v1258
        %v1271 = vpack.c.bf16 %v1261, %v1260
        %v1272 = vpack.c.bf16 %v1263, %v1262
        %v1273 = vpack.c.bf16 %v1265, %v1264
        %v1275 = vlaneseq
        %v1276 = vshrl.u32 %v1275, 7
        %v1277 = vsub.s32 0, %v1276
        %v1278 = vrot.slane %v367, %v1277
        %v1296 = vunpack.c.l.b16 %v351
        %v1297 = vunpack.c.l.b16 %v352
        %v1298 = vunpack.c.l.b16 %v353
        %v1299 = vunpack.c.l.b16 %v354
        %v1300 = vunpack.c.l.b16 %v355
        %v1301 = vunpack.c.l.b16 %v356
        %v1302 = vunpack.c.l.b16 %v357
        %v1303 = vunpack.c.l.b16 %v358
        %v1304 = vunpack.c.l.b16 %v359
        %v1305 = vunpack.c.l.b16 %v360
        %v1306 = vunpack.c.l.b16 %v361
        %v1307 = vunpack.c.l.b16 %v362
        %v1308 = vunpack.c.l.b16 %v363
        %v1309 = vunpack.c.l.b16 %v364
        %v1310 = vunpack.c.l.b16 %v365
        %v1311 = vunpack.c.l.b16 %v366
        %v1312 = vpack.c.b16 %v1297, %v1296
        %v1313 = vpack.c.b16 %v1299, %v1298
        %v1314 = vpack.c.b16 %v1301, %v1300
        %v1315 = vpack.c.b16 %v1303, %v1302
        %v1316 = vpack.c.b16 %v1305, %v1304
        %v1317 = vpack.c.b16 %v1307, %v1306
        %v1318 = vpack.c.b16 %v1309, %v1308
        %v1319 = vpack.c.b16 %v1311, %v1310
        %1328 = vmatprep.subr.bf16.mxu0 0
        %1329 = vmatpush1.bf16.msra.mxu0 %v1319
        %1330 = vmatprep.subr.bf16.mxu0 0
        %1331 = vmatpush1.bf16.msra.mxu0 %v1318
        %1332 = vmatprep.subr.bf16.mxu0 0
        %1333 = vmatpush1.bf16.msra.mxu0 %v1317
        %1334 = vmatprep.subr.bf16.mxu0 0
        %1335 = vmatpush1.bf16.msra.mxu0 %v1316
        %1336 = vmatprep.subr.bf16.mxu0 0
        %1337 = vmatpush1.bf16.msra.mxu0 %v1315
        %1338 = vmatprep.subr.bf16.mxu0 0
        %1339 = vmatpush1.bf16.msra.mxu0 %v1314
        %1340 = vmatprep.subr.bf16.mxu0 0
        %1341 = vmatpush1.bf16.msra.mxu0 %v1313
        %1342 = vmatprep.subr.bf16.mxu0 0
        %1343 = vmatpush1.bf16.msra.mxu0 %v1312
        %1344 = vmatprep.subr.bf16.mxu0 0
        %1345 = vmatpush2.bf16.msra.mxu0 0
        %1346 = vmatprep.subr.bf16.mxu0 0
        %1347 = vmatpush2.bf16.msra.mxu0 0
        %1348 = vmatprep.subr.bf16.mxu0 0
        %1349 = vmatpush2.bf16.msra.mxu0 0
        %1350 = vmatprep.subr.bf16.mxu0 0
        %1351 = vmatpush2.bf16.msra.mxu0 0
        %1352 = vmatprep.subr.bf16.mxu0 0
        %1353 = vmatpush2.bf16.msra.mxu0 0
        %1354 = vmatprep.subr.bf16.mxu0 0
        %1355 = vmatpush2.bf16.msra.mxu0 0
        %1356 = vmatprep.subr.bf16.mxu0 0
        %1357 = vmatpush2.bf16.msra.mxu0 0
        %1358 = vmatprep.subr.bf16.mxu0 0
        %1359 = vmatpush2.bf16.msra.mxu0 0
        %1360 = vmatprep.mubr.bf16.mxu0 0
        %1361 = vmatmul.mubr.bf16.gmra.mxu0 %v1266
        %v1362 = vpop.f32.mrf.mxu0
        %v1363 = vadd.f32 %v1278, %v1362
        %v1364 = vpop.f32.mrf.mxu0
        %v1365 = vpop.f32.mrf.mxu0
        %v1366 = vadd.f32 %v1278, %v1365
        %v1367 = vpop.f32.mrf.mxu0
        %1368 = vmatprep.mubr.bf16.mxu0 0
        %1369 = vmatmul.mubr.bf16.gmra.mxu0 %v1267
        %v1370 = vpop.f32.mrf.mxu0
        %v1371 = vadd.f32 %v1278, %v1370
        %v1372 = vpop.f32.mrf.mxu0
        %v1373 = vpop.f32.mrf.mxu0
        %v1374 = vadd.f32 %v1278, %v1373
        %v1375 = vpop.f32.mrf.mxu0
        %1376 = vmatprep.mubr.bf16.mxu0 0
        %1377 = vmatmul.mubr.bf16.gmra.mxu0 %v1268
        %v1378 = vpop.f32.mrf.mxu0
        %v1379 = vadd.f32 %v1278, %v1378
        %v1380 = vpop.f32.mrf.mxu0
        %v1381 = vpop.f32.mrf.mxu0
        %v1382 = vadd.f32 %v1278, %v1381
        %v1383 = vpop.f32.mrf.mxu0
        %1384 = vmatprep.mubr.bf16.mxu0 0
        %1385 = vmatmul.mubr.bf16.gmra.mxu0 %v1269
        %v1386 = vpop.f32.mrf.mxu0
        %v1387 = vadd.f32 %v1278, %v1386
        %v1388 = vpop.f32.mrf.mxu0
        %v1389 = vpop.f32.mrf.mxu0
        %v1390 = vadd.f32 %v1278, %v1389
        %v1391 = vpop.f32.mrf.mxu0
        %1392 = vmatprep.mubr.bf16.mxu0 0
        %1393 = vmatmul.mubr.bf16.gmra.mxu0 %v1270
        %v1394 = vpop.f32.mrf.mxu0
        %v1395 = vadd.f32 %v1278, %v1394
        %v1396 = vpop.f32.mrf.mxu0
        %v1397 = vpop.f32.mrf.mxu0
        %v1398 = vadd.f32 %v1278, %v1397
        %v1399 = vpop.f32.mrf.mxu0
        %1400 = vmatprep.mubr.bf16.mxu0 0
        %1401 = vmatmul.mubr.bf16.gmra.mxu0 %v1271
        %v1402 = vpop.f32.mrf.mxu0
        %v1403 = vadd.f32 %v1278, %v1402
        %v1404 = vpop.f32.mrf.mxu0
        %v1405 = vpop.f32.mrf.mxu0
        %v1406 = vadd.f32 %v1278, %v1405
        %v1407 = vpop.f32.mrf.mxu0
        %1408 = vmatprep.mubr.bf16.mxu0 0
        %1409 = vmatmul.mubr.bf16.gmra.mxu0 %v1272
        %v1410 = vpop.f32.mrf.mxu0
        %v1411 = vadd.f32 %v1278, %v1410
        %v1412 = vpop.f32.mrf.mxu0
        %v1413 = vpop.f32.mrf.mxu0
        %v1414 = vadd.f32 %v1278, %v1413
        %v1415 = vpop.f32.mrf.mxu0
        %1416 = vmatprep.mubr.bf16.mxu0 0
        %1417 = vmatmul.mubr.bf16.gmra.mxu0 %v1273
        %v1418 = vpop.f32.mrf.mxu0
        %v1419 = vadd.f32 %v1278, %v1418
        %v1420 = vpop.f32.mrf.mxu0
        %v1421 = vpop.f32.mrf.mxu0
        %v1422 = vadd.f32 %v1278, %v1421
        %v1423 = vpop.f32.mrf.mxu0
        %1424 = vdwg.mxu0
        %1425 = vst [vmem:[%s341] sm:$0xff] %v1363
        %1426 = vst [vmem:[%s341 + $0x8] sm:$0xff] %v1366
        %1427 = vst [vmem:[%s341 + $0x10] sm:$0xff] %v1371
        %1428 = vst [vmem:[%s341 + $0x18] sm:$0xff] %v1374
        %1429 = vst [vmem:[%s341 + $0x20] sm:$0xff] %v1379
        %1430 = vst [vmem:[%s341 + $0x28] sm:$0xff] %v1382
        %1431 = vst [vmem:[%s341 + $0x30] sm:$0xff] %v1387
        %1432 = vst [vmem:[%s341 + $0x38] sm:$0xff] %v1390
        %1433 = vst [vmem:[%s341 + $0x40] sm:$0xff] %v1395
        %1434 = vst [vmem:[%s341 + $0x48] sm:$0xff] %v1398
        %1435 = vst [vmem:[%s341 + $0x50] sm:$0xff] %v1403
        %1436 = vst [vmem:[%s341 + $0x58] sm:$0xff] %v1406
        %1437 = vst [vmem:[%s341 + $0x60] sm:$0xff] %v1411
        %1438 = vst [vmem:[%s341 + $0x68] sm:$0xff] %v1414
        %1439 = vst [vmem:[%s341 + $0x70] sm:$0xff] %v1419
        %1440 = vst [vmem:[%s341 + $0x78] sm:$0xff] %v1422
        %s1441 = sand.u32 %s171, 1
        %s1442 = scalar_lea.sflag [#allocation4], %s1441
        %s1443 = sand.u32 %s171, 1
        %s1444 = smul.addr %s1443, 128
        %s1445 = scalar_lea.vmem [#allocation10], %s1444
        // Predicated region
        $region57: #{tpu_custom_call.1} parent=39 // pred_check
          %p1446 = pneg %p181
        $region58: #{tpu_custom_call.1} parent=39 // pred_check_branch
          %1448 = sbr.rel (%p1446) target = $region60
        $region59: #{tpu_custom_call.1} parent=39 // pred_region
          %s1449 = smul.u32 8, %s31
          %s1451 = ssub.s32 2048, 2048
          %1452 = vsyncadd %s1442, %s1451
          %s1453 = smul.addr %s1449, 2
          %s1454 = smul.addr %s30, 32
          %s1455 = sadd.s32 %s1453, %s1454
          %s1456 = smul.addr %s1455, 128
          %s1457 = scalar_lea.hbm %s5, %s1456
          %s1458 = sshll.u32 %s1445, 4
          %s1459 = int_to_ptr.vmem [resolvable:$true] %s1458
          %1464 = dma.vmem_to_hbm [thread:$0]  %s1459, 2048, %s1457, %s1442, 128, 128, 8
        $region60: #{tpu_custom_call.1} parent=39 // pred_fallthru
          _
      $region40: #{tpu_custom_call.1} parent=5 // pred_fallthru
        _
      %p1465 = scmp.le.s32.totalorder 2, %s21
      // Predicated region
      $region61: #{tpu_custom_call.1} parent=5 // pred_check
        %p1466 = pneg %p1465
      $region62: #{tpu_custom_call.1} parent=5 // pred_check_branch
        %1468 = sbr.rel (%p1466) target = $region64
      $region63: #{tpu_custom_call.1} parent=5 // pred_region
        %s1469 = ssub.s32 %s21, 2
        // Predicated region
        $region65: #{tpu_custom_call.1} parent=63 // pred_check
          %p1470 = pneg %p187
        $region66: #{tpu_custom_call.1} parent=63 // pred_check_branch
          %1472 = sbr.rel (%p1470) target = $region68
        $region67: #{tpu_custom_call.1} parent=63 // pred_region
          %s1473 = sand.u32 %s172, 1
          %s1474 = scalar_lea.sflag [#allocation4], %s1473
          %s1475 = sand.u32 %s172, 1
          %s1476 = smul.addr %s1475, 128
          %s1477 = scalar_lea.vmem [#allocation10], %s1476
          %1478 = dma.done %s1474, 2048
        $region68: #{tpu_custom_call.1} parent=63 // pred_fallthru
          _
      $region64: #{tpu_custom_call.1} parent=5 // pred_fallthru
        _
    $region6: #{tpu_custom_call.1} parent=1 // loop_footer
      %s25 = sadd.s32 1, %s21
    $region7: #{tpu_custom_call.1} parent=1 // loop_footer_branch
      %20 = sbr.rel target = $region3
    $region8: #{tpu_custom_call.1} parent=1 // loop_exit
      _
    %1479 = vsyncpa [#allocation3], 1
    %s1480 = scalar_lea.sflag [#allocation3], 1
    %1481 = vsyncpa %s1480, 1
    %1482 = vsyncpa [#allocation6], 1
    %s1483 = scalar_lea.sflag [#allocation6], 1
    %1484 = vsyncpa %s1483, 1
    %1485 = vsyncpa [#allocation9], 1
    %1486 = vsyncpa [#allocation4], 1
    %s1487 = scalar_lea.sflag [#allocation4], 1
    %1488 = vsyncpa %s1487, 1

</llo_original>
